<compile_context>
chip_gen: v7x
topology: tpu7x:2x2x1
jax: 0.10.0
libtpu: 0.0.40
codegen_flags: <defaults>
</compile_context>

<pallas_src>
import functools

import jax
import jax.numpy as jnp
from jax.experimental import pallas as pl
from jax.experimental.pallas import tpu as pltpu

FEAT_DIM = 256     # FTDNN output dim == OutputLayer.in_dim
OUT_DIM = 40       # default out_dim of FTDNNPronscorer
BN_EPS = 1e-5      # PyTorch BatchNorm1d default eps

# 1024 rows * 256 feats * 4 B = 1 MiB per input buffer -> ~85% of HBM roofline
# on v6e, fits comfortably under v5e's 16 MiB scoped-VMEM default.
# (On v7x, 2048-4096 amortizes per-step overhead even better.)
DEFAULT_TILE_R = 1024


def _round_up(x, m):
    return ((x + m - 1) // m) * m


def _linear_kernel(x_ref, w_ref, b_ref, o_ref):
    """One row tile of: out = x @ W_folded + b_folded (BN already folded in)."""
    y = jnp.dot(x_ref[...], w_ref[...], preferred_element_type=jnp.float32)
    o_ref[...] = (y + b_ref[...]).astype(o_ref.dtype)


@functools.partial(jax.jit, static_argnames=("use_bn", "tile_r"))
def ftdnn_pronscorer_forward(feats, weight, bias, *, use_bn=False,
                             tile_r=DEFAULT_TILE_R):
    """feats: (B, T, 256) FTDNN features. weight: (out, in) as in nn.Linear.

    Returns (B, T, out_dim), matching OutputLayer.forward semantics
    (optional BatchNorm1d(affine=False) over features, then Linear).
    """
    B, T, D = feats.shape
    assert D == FEAT_DIM
    out_dim = weight.shape[0]
    rows = B * T

    x2 = feats.reshape(rows, D)                  # view-like reshape, no HBM copy

    # Pre-transpose weight and (optionally) fold BN into the linear params.
    w_t = weight.T.astype(jnp.float32)           # (256, out_dim)
    b_row = bias.astype(jnp.float32).reshape(1, out_dim)
    if use_bn:
        # Training-mode BatchNorm1d(affine=False): per-feature stats over the
        # flattened (batch*seq) axis, biased variance.
        xf = x2.astype(jnp.float32)
        mean = jnp.mean(xf, axis=0)                              # (256,)
        var = jnp.mean(jnp.square(xf - mean), axis=0)            # biased
        scale = jax.lax.rsqrt(var + BN_EPS)                      # (256,)
        b_row = b_row - (mean * scale) @ w_t                     # (1, out_dim)
        w_t = w_t * scale[:, None]                               # (256, out_dim)

    # Clamp the tile so tiny inputs don't allocate an oversized VMEM block.
    tile_r = min(tile_r, _round_up(rows, 8))
    grid = (pl.cdiv(rows, tile_r),)

    out = pl.pallas_call(
        _linear_kernel,
        out_shape=jax.ShapeDtypeStruct((rows, out_dim), feats.dtype),
        grid=grid,
        in_specs=[
            pl.BlockSpec((tile_r, D), lambda i: (i, 0)),      # streamed rows
            pl.BlockSpec((D, out_dim), lambda i: (0, 0)),     # VMEM-resident W
            pl.BlockSpec((1, out_dim), lambda i: (0, 0)),     # VMEM-resident b
        ],
        out_specs=pl.BlockSpec((tile_r, out_dim), lambda i: (i, 0)),
        compiler_params=pltpu.CompilerParams(
            dimension_semantics=("parallel",)),
    )(x2, w_t, b_row)

    return out.reshape(B, T, out_dim)


def _init_linear_params(key, in_dim, out_dim):
    """Deterministic nn.Linear-style init: U(-1/sqrt(in), 1/sqrt(in))."""
    kw, kb = jax.random.split(key)
    bound = 1.0 / jnp.sqrt(jnp.float32(in_dim))
    weight = jax.random.uniform(kw, (out_dim, in_dim), jnp.float32, -bound, bound)
    bias = jax.random.uniform(kb, (out_dim,), jnp.float32, -bound, bound)
    return weight, bias


if __name__ == "__main__":
    key = jax.random.PRNGKey(0)
    k_feat, k_lin = jax.random.split(key)

    # Small shapes: batch=2, seq=8, feature dim = 256 (FTDNN output dim).
    B, T = 2, 8
    feats = jax.random.normal(k_feat, (B, T, FEAT_DIM), dtype=jnp.float32)
    weight, bias = _init_linear_params(k_lin, FEAT_DIM, OUT_DIM)

    # Default path: batchnorm=None in FTDNNPronscorer -> use_bn=False.
    out = ftdnn_pronscorer_forward(feats, weight, bias, use_bn=False)
    out = jax.block_until_ready(out)
    assert out.shape == (B, T, OUT_DIM), out.shape

    ref = feats.reshape(B * T, FEAT_DIM) @ weight.T + bias
    ref = ref.reshape(B, T, OUT_DIM)
    assert jnp.allclose(out, ref, atol=1e-4, rtol=1e-4)

    # BN path ('final'/'last'/'firstlast' batchnorm): training-mode batch stats.
    out_bn = ftdnn_pronscorer_forward(feats, weight, bias, use_bn=True)
    out_bn = jax.block_until_ready(out_bn)
    x2 = feats.reshape(B * T, FEAT_DIM)
    mean = jnp.mean(x2, axis=0)
    var = jnp.mean(jnp.square(x2 - mean), axis=0)
    xn = (x2 - mean) * jax.lax.rsqrt(var + BN_EPS)
    ref_bn = (xn @ weight.T + bias).reshape(B, T, OUT_DIM)
    assert jnp.allclose(out_bn, ref_bn, atol=1e-4, rtol=1e-4)

    print("KERNEL_OK")
</pallas_src>

<mosaic_0001>
module attributes {stable_mosaic.version = 11 : i64} {
  func.func @_linear_kernel(%arg0: i32, %arg1: memref<16x256xf32, #tpu.memory_space<vmem>>, %arg2: memref<256x40xf32, #tpu.memory_space<vmem>>, %arg3: memref<1x40xf32, #tpu.memory_space<vmem>>, %arg4: memref<16x40xf32, #tpu.memory_space<vmem>>) attributes {dimension_semantics = [#tpu.dimension_semantics<parallel>], iteration_bounds = array<i64: 1>, scalar_prefetch = 0 : i64, scratch_operands = 0 : i64, tpu.core_type = #tpu.core_type<tc>, window_params = [{transform_indices = @transform_0, window_bounds = array<i64: 16, 256>}, {pipeline_mode = #tpu.pipeline_mode<synchronous>, transform_indices = @transform_1, window_bounds = array<i64: 256, 40>}, {pipeline_mode = #tpu.pipeline_mode<synchronous>, transform_indices = @transform_2, window_bounds = array<i64: 1, 40>}, {transform_indices = @transform_3, window_bounds = array<i64: 16, 40>}]} {
    %c0 = arith.constant 0 : index
    %c0_0 = arith.constant 0 : index
    %0 = vector.load %arg1[%c0, %c0_0] : memref<16x256xf32, #tpu.memory_space<vmem>>, vector<16x256xf32>
    %c0_1 = arith.constant 0 : index
    %c0_2 = arith.constant 0 : index
    %1 = vector.load %arg2[%c0_1, %c0_2] : memref<256x40xf32, #tpu.memory_space<vmem>>, vector<256x40xf32>
    %cst = arith.constant dense<0.000000e+00> : vector<16x40xf32>
    %2 = tpu.matmul %0, %1, %cst {dimension_numbers = #tpu.dot_dimension_numbers<[1], [0], [0], [1], [0, 0, 1, 1], [], []>} : vector<16x256xf32>, vector<256x40xf32>, vector<16x40xf32> -> vector<16x40xf32>
    %c0_3 = arith.constant 0 : index
    %c0_4 = arith.constant 0 : index
    %3 = vector.load %arg3[%c0_3, %c0_4] : memref<1x40xf32, #tpu.memory_space<vmem>>, vector<1x40xf32>
    %4 = vector.broadcast %3 : vector<1x40xf32> to vector<16x40xf32>
    %5 = arith.addf %2, %4 : vector<16x40xf32>
    %c0_5 = arith.constant 0 : index
    %c0_6 = arith.constant 0 : index
    %6 = vector.load %arg4[%c0_5, %c0_6] : memref<16x40xf32, #tpu.memory_space<vmem>>, vector<16x40xf32>
    tpu.vector_store %arg4[%c0_5, %c0_6], %5 {strides = array<i32>} : memref<16x40xf32, #tpu.memory_space<vmem>>, vector<16x40xf32>,
    return
  }
  func.func @transform_0(%arg0: i32) -> (i32, i32) {
    %c0_i32 = arith.constant 0 : i32
    %c0_i32_0 = arith.constant 0 : i32
    return %arg0, %c0_i32 : i32, i32
  }
  func.func @transform_1(%arg0: i32) -> (i32, i32) {
    %c0_i32 = arith.constant 0 : i32
    %c0_i32_0 = arith.constant 0 : i32
    %c0_i32_1 = arith.constant 0 : i32
    return %c0_i32, %c0_i32_0 : i32, i32
  }
  func.func @transform_2(%arg0: i32) -> (i32, i32) {
    %c0_i32 = arith.constant 0 : i32
    %c0_i32_0 = arith.constant 0 : i32
    %c0_i32_1 = arith.constant 0 : i32
    return %c0_i32, %c0_i32_0 : i32, i32
  }
  func.func @transform_3(%arg0: i32) -> (i32, i32) {
    %c0_i32 = arith.constant 0 : i32
    %c0_i32_0 = arith.constant 0 : i32
    return %arg0, %c0_i32 : i32, i32
  }
}

</mosaic_0001>

<llo_original>
// kernel: ftdnn_pronscorer_forward.1
$region0: #{ftdnn_pronscorer_forward.1}
  #allocation0 [shape = 'u32[]', space=smem, size = 0x4, offset = 0x4, fixed_abs, tag = 'smem constant byte address 0x4 - core index']
  #allocation1 [shape = 'u32[144,128]{1,0:T(1,128)}', space=vmem, size = 0x12000, scoped, tag = 'internal scratch']
  %s0 = inlined_call_operand.vmem [shape: f32[16,256], index: 0, kind: input, shape index: {}]
  %s1 = inlined_call_operand.vmem [shape: f32[256,40], index: 1, kind: input, shape index: {}]
  %s2 = inlined_call_operand.vmem [shape: f32[1,40], index: 2, kind: input, shape index: {}]
  %s3 = inlined_call_operand.hbm [shape: f32[16,40], index: 3, kind: output, shape index: {}]
  %s4 = sld [smem:[#allocation0]]
  $region22: #{ftdnn_pronscorer_forward.1} parent=0
    _
  %s6 = ssub.s32 1, %s4
  %s7 = scalar_select 0, %s6, %s4
  $region1: #{ftdnn_pronscorer_forward.1} parent=0
    #allocation2 [shape = 'u8[8192]{0}', space=vmem, size = 0x2000, scoped, tag = 'output window, operand 0, single buffered']
    #allocation3 [shape = 's32[1]{0}', space=sflag, size = 0x4, scoped, tag = 'scoped memory for ftdnn_pronscorer_forward.1']
    %8 = vsyncpa [#allocation3], 0
    // Predicated region
    $region2: #{ftdnn_pronscorer_forward.1} parent=1 // pred_check
      _
    $region3: #{ftdnn_pronscorer_forward.1} parent=1 // pred_check_branch
      %10 = sbr.rel (0) target = $region5
    $region4: #{ftdnn_pronscorer_forward.1} parent=1 // pred_region
      _
    $region5: #{ftdnn_pronscorer_forward.1} parent=1 // pred_fallthru
      _
    // Predicated region
    $region6: #{ftdnn_pronscorer_forward.1} parent=1 // pred_check
      _
    $region7: #{ftdnn_pronscorer_forward.1} parent=1 // pred_check_branch
      %12 = sbr.rel (0) target = $region9
    $region8: #{ftdnn_pronscorer_forward.1} parent=1 // pred_region
      _
    $region9: #{ftdnn_pronscorer_forward.1} parent=1 // pred_fallthru
      _
    // Predicated region
    $region10: #{ftdnn_pronscorer_forward.1} parent=1 // pred_check
      _
    $region11: #{ftdnn_pronscorer_forward.1} parent=1 // pred_check_branch
      %14 = sbr.rel (0) target = $region13
    $region12: #{ftdnn_pronscorer_forward.1} parent=1 // pred_region
      _
    $region13: #{ftdnn_pronscorer_forward.1} parent=1 // pred_fallthru
      _
    %v15 = vld [vmem:[%s0] sm:$0xff]
    %v16 = vld [vmem:[%s0 + $0x8] sm:$0xff]
    %v17 = vld [vmem:[%s0 + $0x10] sm:$0xff]
    %v18 = vld [vmem:[%s0 + $0x18] sm:$0xff]
    %v19 = vld [vmem:[%s1] sm:$0xff]
    %v20 = vld [vmem:[%s1 + $0x8] sm:$0xff]
    %v21 = vld [vmem:[%s1 + $0x10] sm:$0xff]
    %v22 = vld [vmem:[%s1 + $0x18] sm:$0xff]
    %v23 = vld [vmem:[%s1 + $0x20] sm:$0xff]
    %v24 = vld [vmem:[%s1 + $0x28] sm:$0xff]
    %v25 = vld [vmem:[%s1 + $0x30] sm:$0xff]
    %v26 = vld [vmem:[%s1 + $0x38] sm:$0xff]
    %v27 = vld [vmem:[%s1 + $0x40] sm:$0xff]
    %v28 = vld [vmem:[%s1 + $0x48] sm:$0xff]
    %v29 = vld [vmem:[%s1 + $0x50] sm:$0xff]
    %v30 = vld [vmem:[%s1 + $0x58] sm:$0xff]
    %v31 = vld [vmem:[%s1 + $0x60] sm:$0xff]
    %v32 = vld [vmem:[%s1 + $0x68] sm:$0xff]
    %v33 = vld [vmem:[%s1 + $0x70] sm:$0xff]
    %v34 = vld [vmem:[%s1 + $0x78] sm:$0xff]
    %v35 = vld [vmem:[%s1 + $0x80] sm:$0xff]
    %v36 = vld [vmem:[%s1 + $0x88] sm:$0xff]
    %v37 = vld [vmem:[%s1 + $0x90] sm:$0xff]
    %v38 = vld [vmem:[%s1 + $0x98] sm:$0xff]
    %v39 = vld [vmem:[%s1 + $0xa0] sm:$0xff]
    %v40 = vld [vmem:[%s1 + $0xa8] sm:$0xff]
    %v41 = vld [vmem:[%s1 + $0xb0] sm:$0xff]
    %v42 = vld [vmem:[%s1 + $0xb8] sm:$0xff]
    %v43 = vld [vmem:[%s1 + $0xc0] sm:$0xff]
    %v44 = vld [vmem:[%s1 + $0xc8] sm:$0xff]
    %v45 = vld [vmem:[%s1 + $0xd0] sm:$0xff]
    %v46 = vld [vmem:[%s1 + $0xd8] sm:$0xff]
    %v47 = vld [vmem:[%s1 + $0xe0] sm:$0xff]
    %v48 = vld [vmem:[%s1 + $0xe8] sm:$0xff]
    %v49 = vld [vmem:[%s1 + $0xf0] sm:$0xff]
    %v50 = vld [vmem:[%s1 + $0xf8] sm:$0xff]
    %v51 = vld [vmem:[%s2] sm:$0x1]
    %v53 = vlaneseq
    %v54 = vshrl.u32 %v53, 7
    %v55 = vsub.s32 0, %v54
    %v56 = vrot.slane %v51, %v55
    %58 = vmatprep.subr.mxu0 0.0
    %59 = vmatpush1.msra.mxu0 %v19
    %60 = vmatprep.subr.mxu0 0.0
    %61 = vmatpush1.msra.mxu0 %v20
    %62 = vmatprep.subr.mxu0 0.0
    %63 = vmatpush1.msra.mxu0 %v21
    %64 = vmatprep.subr.mxu0 0.0
    %65 = vmatpush1.msra.mxu0 %v22
    %66 = vmatprep.subr.mxu0 0.0
    %67 = vmatpush1.msra.mxu0 %v23
    %68 = vmatprep.subr.mxu0 0.0
    %69 = vmatpush1.msra.mxu0 %v24
    %70 = vmatprep.subr.mxu0 0.0
    %71 = vmatpush1.msra.mxu0 %v25
    %72 = vmatprep.subr.mxu0 0.0
    %73 = vmatpush1.msra.mxu0 %v26
    %74 = vmatprep.subr.mxu0 0.0
    %75 = vmatpush1.msra.mxu0 %v27
    %76 = vmatprep.subr.mxu0 0.0
    %77 = vmatpush1.msra.mxu0 %v28
    %78 = vmatprep.subr.mxu0 0.0
    %79 = vmatpush1.msra.mxu0 %v29
    %80 = vmatprep.subr.mxu0 0.0
    %81 = vmatpush1.msra.mxu0 %v30
    %82 = vmatprep.subr.mxu0 0.0
    %83 = vmatpush1.msra.mxu0 %v31
    %84 = vmatprep.subr.mxu0 0.0
    %85 = vmatpush1.msra.mxu0 %v32
    %86 = vmatprep.subr.mxu0 0.0
    %87 = vmatpush1.msra.mxu0 %v33
    %88 = vmatprep.subr.mxu0 0.0
    %89 = vmatpush1.msra.mxu0 %v34
    %90 = vmatprep.subr.mxu0 0.0
    %91 = vmatpush1.msra.mxu0 %v35
    %92 = vmatprep.subr.mxu0 0.0
    %93 = vmatpush1.msra.mxu0 %v36
    %94 = vmatprep.subr.mxu0 0.0
    %95 = vmatpush1.msra.mxu0 %v37
    %96 = vmatprep.subr.mxu0 0.0
    %97 = vmatpush1.msra.mxu0 %v38
    %98 = vmatprep.subr.mxu0 0.0
    %99 = vmatpush1.msra.mxu0 %v39
    %100 = vmatprep.subr.mxu0 0.0
    %101 = vmatpush1.msra.mxu0 %v40
    %102 = vmatprep.subr.mxu0 0.0
    %103 = vmatpush1.msra.mxu0 %v41
    %104 = vmatprep.subr.mxu0 0.0
    %105 = vmatpush1.msra.mxu0 %v42
    %106 = vmatprep.subr.mxu0 0.0
    %107 = vmatpush1.msra.mxu0 %v43
    %108 = vmatprep.subr.mxu0 0.0
    %109 = vmatpush1.msra.mxu0 %v44
    %110 = vmatprep.subr.mxu0 0.0
    %111 = vmatpush1.msra.mxu0 %v45
    %112 = vmatprep.subr.mxu0 0.0
    %113 = vmatpush1.msra.mxu0 %v46
    %114 = vmatprep.subr.mxu0 0.0
    %115 = vmatpush1.msra.mxu0 %v47
    %116 = vmatprep.subr.mxu0 0.0
    %117 = vmatpush1.msra.mxu0 %v48
    %118 = vmatprep.subr.mxu0 0.0
    %119 = vmatpush1.msra.mxu0 %v49
    %120 = vmatprep.subr.mxu0 0.0
    %121 = vmatpush1.msra.mxu0 %v50
    %122 = vmatprep.mubr.f32.mxu0 %v16
    %123 = vmatmul.mubr.f32.gmra.mrb[0].mxu0 %v15
    %v124 = vpop.f32.mrb[0].mxu0
    %v125 = vadd.f32 %v56, %v124
    %v126 = vpop.f32.mrb[0].mxu0
    %127 = vmatprep.mubr.f32.mxu0 %v18
    %128 = vmatmul.mubr.f32.gmra.mrb[0].mxu0 %v17
    %v129 = vpop.f32.mrb[0].mxu0
    %v130 = vadd.f32 %v56, %v129
    %v131 = vpop.f32.mrb[0].mxu0
    %132 = vdwg.mxu0
    %vm133 = vcmask 326656
    %134 = vst.msk [vmem:[#allocation2] sm:$0xff] %vm133, %v125
    %135 = vst.msk [vmem:[#allocation2 + $0x8] sm:$0xff] %vm133, %v130
    // Predicated region
    $region14: #{ftdnn_pronscorer_forward.1} parent=1 // pred_check
      _
    $region15: #{ftdnn_pronscorer_forward.1} parent=1 // pred_check_branch
      %137 = sbr.rel (0) target = $region17
    $region16: #{ftdnn_pronscorer_forward.1} parent=1 // pred_region
      %s139 = ssub.s32 256, 256
      %140 = vsyncadd [#allocation3], %s139
      %s141 = sshll.u32 [#allocation2], 4
      %s142 = int_to_ptr.vmem [resolvable:$true] %s141
      %147 = dma.vmem_to_hbm [thread:$0]  %s142, 256, %s3, [#allocation3], 128, 128, 8
    $region17: #{ftdnn_pronscorer_forward.1} parent=1 // pred_fallthru
      _
    // Predicated region
    $region18: #{ftdnn_pronscorer_forward.1} parent=1 // pred_check
      _
    $region19: #{ftdnn_pronscorer_forward.1} parent=1 // pred_check_branch
      %149 = sbr.rel (0) target = $region21
    $region20: #{ftdnn_pronscorer_forward.1} parent=1 // pred_region
      %150 = dma.done [#allocation3], 256
    $region21: #{ftdnn_pronscorer_forward.1} parent=1 // pred_fallthru
      _
    %151 = vsyncpa [#allocation3], 1

</llo_original>
